<compile_context>
chip_gen: v6e
topology: v6e:2x2x1
jax: 0.10.0
libtpu: 0.0.40
codegen_flags: <defaults>
</compile_context>

<pallas_src>
import functools
import math

import numpy as np

import jax
import jax.numpy as jnp
from jax.experimental import pallas as pl
from jax.experimental.pallas import tpu as pltpu


def _round_up(a, b):
    return ((a + b - 1) // b) * b


def _vmem_limit_bytes():
    """Generation-aware scoped-VMEM limit: ~96 MiB on 128 MiB parts, ~48 MiB on v7x."""
    try:
        cap = pltpu.get_tpu_info().vmem_capacity_bytes
    except Exception:
        cap = 64 * 1024 * 1024
    return max(32 * 1024 * 1024, min(int(cap) * 3 // 4, 96 * 1024 * 1024))


def _build_expand_matrices(num_heads, hidden_size, attention_size, scale, ha_pad):
    """Static 0/1 (and scale) matrices that move the head-vs-head broadcast/reduce onto the MXU.

    Flattenings used:
      pair index  (h1, h2)      -> h1*H + h2            (contiguous Dh / Da blocks per pair)
      score index (h1, h2)      -> h2*H + h1            ("alt" layout: h1 is the inner lane index,
                                                          so each softmax group is stride-H lanes
                                                          reachable with H contiguous (rows,H) slices)
      output index (h1, a)      -> h1*Da + a            (matches torch .view(B,S,H*Da))
    """
    H, Dh, Da = num_heads, hidden_size, attention_size
    hq, ha = H * Dh, H * Da
    eq = np.zeros((hq, H * hq), np.float32)        # q[h1,d]        -> q_exp[(h1,h2),d] * scale
    summ = np.zeros((H * hq, H * H), np.float32)   # prod[(h1,h2),d] -> scores[h2*H + h1]
    bp = np.zeros((H * H, H * ha), np.float32)     # p[h2*H + h1]    -> p_exp[(h1,h2),a]
    bs = np.zeros((H * ha, ha_pad), np.float32)    # prod2[(h1,h2),a]-> ctx[h1*Da + a]  (lane-padded)
    for h1 in range(H):
        for h2 in range(H):
            pair = h1 * H + h2
            alt = h2 * H + h1
            for d in range(Dh):
                eq[h1 * Dh + d, pair * Dh + d] = scale
                summ[pair * Dh + d, alt] = 1.0
            for a in range(Da):
                bp[alt, pair * Da + a] = 1.0
                bs[pair * Da + a, h1 * Da + a] = 1.0
    return eq, summ, bp, bs


def _proj_attn_kernel(x_ref, w_ref, b_ref, eq_ref, sum_ref, bp_ref, bs_ref, o_ref,
                      *, num_heads, hq, ha, approx_recip):
    """One row tile: fused projection + MXU-based head-vs-head attention."""
    H = num_heads

    # ---- Fused q|k|v projection: one wide MXU matmul, f32 accumulation. ----
    qkv = jnp.dot(x_ref[...], w_ref[...], preferred_element_type=jnp.float32)
    qkv = qkv + b_ref[...].astype(jnp.float32)
    q = qkv[:, 0:hq]                    # (tm, H*Dh)
    k = qkv[:, hq:2 * hq]               # (tm, H*Dh)
    v = qkv[:, 2 * hq:2 * hq + ha]      # (tm, H*Da)

    # ---- Scores on the MXU: expand q (scale folded into eq), lane-tile k, multiply, block-sum.
    q_exp = jnp.dot(q, eq_ref[...], preferred_element_type=jnp.float32)      # (tm, H*hq)
    k_exp = jnp.concatenate([k] * H, axis=-1)                                # (tm, H*hq)
    scores = jnp.dot(q_exp * k_exp, sum_ref[...],
                     preferred_element_type=jnp.float32)                     # (tm, H*H), [h2*H+h1]

    # ---- Per-head softmax over H lanes (stride-H groups): H-1 static (tm,H) max/add ops,
    # broadcast back with a single lane concat; reciprocal on the otherwise-idle EUP slot.
    m = scores[:, 0:H]
    for h2 in range(1, H):
        m = jnp.maximum(m, scores[:, h2 * H:(h2 + 1) * H])
    e = jnp.exp(scores - jnp.concatenate([m] * H, axis=-1))
    s = e[:, 0:H]
    for h2 in range(1, H):
        s = s + e[:, h2 * H:(h2 + 1) * H]
    if approx_recip:
        inv = pl.reciprocal(s, approx=True)
    else:
        inv = 1.0 / s
    p = e * jnp.concatenate([inv] * H, axis=-1)                              # (tm, H*H)

    # ---- Context on the MXU: expand probs, lane-tile v, multiply, block-sum.
    # bs_ref already scatters into a lane-dense (tm, ha_pad) tile (padding columns are zero),
    # so the final store is a single unmasked vst.
    p_exp = jnp.dot(p, bp_ref[...], preferred_element_type=jnp.float32)      # (tm, H*ha)
    v_exp = jnp.concatenate([v] * H, axis=-1)                                # (tm, H*ha)
    ctx = jnp.dot(p_exp * v_exp, bs_ref[...],
                  preferred_element_type=jnp.float32)                        # (tm, ha_pad)
    # Downcast to the input dtype after f32 accumulation (bf16 inputs round here, by design).
    o_ref[...] = ctx.astype(o_ref.dtype)


def projection_attention(x, wq, bq, wk, bk, wv, bv, *,
                         num_heads, hidden_size, attention_size,
                         tm=512, approx_recip=True):
    """x: (B, S, D); weights stored as (in, out); biases as (1, out).

    tm is the row tile (256-aligned by default; sweep 512-1024 on v6e, 128-aligned on v5e).
    approx_recip=False uses an exact divide for the softmax denominator if tighter numerics
    are required downstream.
    """
    B, S, D = x.shape
    N = B * S
    H = num_heads
    hq = H * hidden_size
    ha = H * attention_size
    ha_pad = _round_up(max(ha, 128), 128)      # lane-dense output block -> unmasked vst
    scale = 1.0 / math.sqrt(hidden_size)

    # Row tile: 8-aligned always, 128/256-aligned when large, and at least 2 grid steps when
    # possible so v7x's two TensorCores both get work ("parallel" axis is sharded across them).
    N8 = _round_up(N, 8)
    if N8 >= 2 * tm:
        tm_eff = tm
    elif N8 >= 256:
        tm_eff = _round_up(pl.cdiv(N8, 2), 128)
    else:
        tm_eff = _round_up(pl.cdiv(N8, 2), 8)
    tm_eff = max(8, min(tm_eff, N8))
    grid = (pl.cdiv(N, tm_eff),)

    # Host-side one-time fusion / constant construction.
    w_all = jnp.concatenate([wq, wk, wv], axis=1)          # (D, 2*hq + ha)
    b_all = jnp.concatenate([bq, bk, bv], axis=1)          # (1, 2*hq + ha)
    eq_np, sum_np, bp_np, bs_np = _build_expand_matrices(
        H, hidden_size, attention_size, scale, ha_pad)
    eq_m = jnp.asarray(eq_np)
    sum_m = jnp.asarray(sum_np)
    bp_m = jnp.asarray(bp_np)
    bs_m = jnp.asarray(bs_np)

    # No host-side row padding: Pallas handles the ragged last block; garbage rows of a partial
    # input tile may produce non-finite intermediates but their output rows are never written back.
    xf = x.reshape(N, D)

    kernel = functools.partial(
        _proj_attn_kernel, num_heads=H, hq=hq, ha=ha, approx_recip=approx_recip)

    out = pl.pallas_call(
        kernel,
        out_shape=jax.ShapeDtypeStruct((N, ha_pad), x.dtype),
        grid_spec=pltpu.PrefetchScalarGridSpec(
            num_scalar_prefetch=0,
            grid=grid,
            in_specs=[
                pl.BlockSpec((tm_eff, D), lambda i: (i, 0)),            # x rows
                pl.BlockSpec((D, 2 * hq + ha), lambda i: (0, 0)),       # fused [Wq|Wk|Wv]
                pl.BlockSpec((1, 2 * hq + ha), lambda i: (0, 0)),       # fused [bq|bk|bv]
                pl.BlockSpec((hq, H * hq), lambda i: (0, 0)),           # EQ (scale folded in)
                pl.BlockSpec((H * hq, H * H), lambda i: (0, 0)),        # SUM (scores scatter)
                pl.BlockSpec((H * H, H * ha), lambda i: (0, 0)),        # BP  (probs expand)
                pl.BlockSpec((H * ha, ha_pad), lambda i: (0, 0)),       # BS  (context block-sum + pad)
            ],
            out_specs=pl.BlockSpec((tm_eff, ha_pad), lambda i: (i, 0)),
        ),
        compiler_params=pltpu.CompilerParams(
            dimension_semantics=("parallel",),
            vmem_limit_bytes=_vmem_limit_bytes(),
        ),
    )(xf, w_all, b_all, eq_m, sum_m, bp_m, bs_m)

    return out[:, :ha].reshape(B, S, ha)


def _reference(x, wq, bq, wk, bk, wv, bv, num_heads, hidden_size, attention_size):
    """Pure-JAX mirror of the PyTorch forward, for correctness checking."""
    B, S, _ = x.shape
    q = (x @ wq + bq[0]).reshape(B, S, num_heads, hidden_size)
    k = (x @ wk + bk[0]).reshape(B, S, num_heads, hidden_size)
    v = (x @ wv + bv[0]).reshape(B, S, num_heads, attention_size)
    scores = jnp.einsum("bshd,bsgd->bshg", q, k) / math.sqrt(hidden_size)
    probs = jax.nn.softmax(scores, axis=-1)
    ctx = jnp.einsum("bshg,bsga->bsha", probs, v)
    return ctx.reshape(B, S, num_heads * attention_size)


if __name__ == "__main__":
    # Small shapes consistent with the module.
    B, S = 2, 8
    input_dim = 32
    hidden_size = 16
    attention_size = 8
    num_heads = 2

    key = jax.random.PRNGKey(0)
    kx, kwq, kbq, kwk, kbk, kwv, kbv = jax.random.split(key, 7)

    # Deterministic nn.Linear-style init, weights stored pre-transposed as (in, out).
    bound = 1.0 / math.sqrt(input_dim)
    hq = num_heads * hidden_size
    ha = num_heads * attention_size
    wq = jax.random.uniform(kwq, (input_dim, hq), jnp.float32, -bound, bound)
    bq = jax.random.uniform(kbq, (1, hq), jnp.float32, -bound, bound)
    wk = jax.random.uniform(kwk, (input_dim, hq), jnp.float32, -bound, bound)
    bk = jax.random.uniform(kbk, (1, hq), jnp.float32, -bound, bound)
    wv = jax.random.uniform(kwv, (input_dim, ha), jnp.float32, -bound, bound)
    bv = jax.random.uniform(kbv, (1, ha), jnp.float32, -bound, bound)

    x = jax.random.normal(kx, (B, S, input_dim), jnp.float32)

    out = projection_attention(
        x, wq, bq, wk, bk, wv, bv,
        num_heads=num_heads, hidden_size=hidden_size, attention_size=attention_size,
    )
    out = jax.block_until_ready(out)

    ref = _reference(x, wq, bq, wk, bk, wv, bv, num_heads, hidden_size, attention_size)
    assert out.shape == (B, S, num_heads * attention_size)
    # Tolerance covers the EUP approximate reciprocal used for the softmax denominator.
    assert jnp.allclose(out, ref, atol=5e-3, rtol=5e-3), "mismatch vs reference"
    assert bool(jnp.all(jnp.isfinite(out)))

    print("KERNEL_OK")
</pallas_src>

<mosaic_0001>
module attributes {stable_mosaic.version = 11 : i64} {
  func.func @_proj_attn_kernel(%arg0: i32, %arg1: memref<8x32xf32, #tpu.memory_space<vmem>>, %arg2: memref<32x80xf32, #tpu.memory_space<vmem>>, %arg3: memref<1x80xf32, #tpu.memory_space<vmem>>, %arg4: memref<32x64xf32, #tpu.memory_space<vmem>>, %arg5: memref<64x4xf32, #tpu.memory_space<vmem>>, %arg6: memref<4x32xf32, #tpu.memory_space<vmem>>, %arg7: memref<32x128xf32, #tpu.memory_space<vmem>>, %arg8: memref<8x128xf32, #tpu.memory_space<vmem>>) attributes {dimension_semantics = [#tpu.dimension_semantics<parallel>], iteration_bounds = array<i64: 2>, scalar_prefetch = 0 : i64, scratch_operands = 0 : i64, tpu.core_type = #tpu.core_type<tc>, window_params = [{transform_indices = @transform_0, window_bounds = array<i64: 8, 32>}, {pipeline_mode = #tpu.pipeline_mode<synchronous>, transform_indices = @transform_1, window_bounds = array<i64: 32, 80>}, {pipeline_mode = #tpu.pipeline_mode<synchronous>, transform_indices = @transform_2, window_bounds = array<i64: 1, 80>}, {pipeline_mode = #tpu.pipeline_mode<synchronous>, transform_indices = @transform_3, window_bounds = array<i64: 32, 64>}, {pipeline_mode = #tpu.pipeline_mode<synchronous>, transform_indices = @transform_4, window_bounds = array<i64: 64, 4>}, {pipeline_mode = #tpu.pipeline_mode<synchronous>, transform_indices = @transform_5, window_bounds = array<i64: 4, 32>}, {pipeline_mode = #tpu.pipeline_mode<synchronous>, transform_indices = @transform_6, window_bounds = array<i64: 32, 128>}, {transform_indices = @transform_7, window_bounds = array<i64: 8, 128>}]} {
    %c0 = arith.constant 0 : index
    %c0_0 = arith.constant 0 : index
    %0 = vector.load %arg1[%c0, %c0_0] : memref<8x32xf32, #tpu.memory_space<vmem>>, vector<8x32xf32>
    %c0_1 = arith.constant 0 : index
    %c0_2 = arith.constant 0 : index
    %1 = vector.load %arg2[%c0_1, %c0_2] : memref<32x80xf32, #tpu.memory_space<vmem>>, vector<32x80xf32>
    %cst = arith.constant dense<0.000000e+00> : vector<8x80xf32>
    %2 = tpu.matmul %0, %1, %cst {dimension_numbers = #tpu.dot_dimension_numbers<[1], [0], [0], [1], [0, 0, 1, 1], [], []>} : vector<8x32xf32>, vector<32x80xf32>, vector<8x80xf32> -> vector<8x80xf32>
    %c0_3 = arith.constant 0 : index
    %c0_4 = arith.constant 0 : index
    %3 = vector.load %arg3[%c0_3, %c0_4] : memref<1x80xf32, #tpu.memory_space<vmem>>, vector<1x80xf32>
    %4 = vector.broadcast %3 : vector<1x80xf32> to vector<8x80xf32>
    %5 = arith.addf %2, %4 : vector<8x80xf32>
    %6 = vector.extract_strided_slice %5 {offsets = [0, 0], sizes = [8, 32], strides = [1, 1]} : vector<8x80xf32> to vector<8x32xf32>
    %7 = vector.extract_strided_slice %5 {offsets = [0, 32], sizes = [8, 32], strides = [1, 1]} : vector<8x80xf32> to vector<8x32xf32>
    %8 = vector.extract_strided_slice %5 {offsets = [0, 64], sizes = [8, 16], strides = [1, 1]} : vector<8x80xf32> to vector<8x16xf32>
    %c0_5 = arith.constant 0 : index
    %c0_6 = arith.constant 0 : index
    %9 = vector.load %arg4[%c0_5, %c0_6] : memref<32x64xf32, #tpu.memory_space<vmem>>, vector<32x64xf32>
    %cst_7 = arith.constant dense<0.000000e+00> : vector<8x64xf32>
    %10 = tpu.matmul %6, %9, %cst_7 {dimension_numbers = #tpu.dot_dimension_numbers<[1], [0], [0], [1], [0, 0, 1, 1], [], []>} : vector<8x32xf32>, vector<32x64xf32>, vector<8x64xf32> -> vector<8x64xf32>
    %11 = tpu.concatenate %7, %7 in 1 : vector<8x32xf32>, vector<8x32xf32> -> vector<8x64xf32>
    %12 = arith.mulf %10, %11 : vector<8x64xf32>
    %c0_8 = arith.constant 0 : index
    %c0_9 = arith.constant 0 : index
    %13 = vector.load %arg5[%c0_8, %c0_9] : memref<64x4xf32, #tpu.memory_space<vmem>>, vector<64x4xf32>
    %cst_10 = arith.constant dense<0.000000e+00> : vector<8x4xf32>
    %14 = tpu.matmul %12, %13, %cst_10 {dimension_numbers = #tpu.dot_dimension_numbers<[1], [0], [0], [1], [0, 0, 1, 1], [], []>} : vector<8x64xf32>, vector<64x4xf32>, vector<8x4xf32> -> vector<8x4xf32>
    %15 = vector.extract_strided_slice %14 {offsets = [0, 0], sizes = [8, 2], strides = [1, 1]} : vector<8x4xf32> to vector<8x2xf32>
    %16 = vector.extract_strided_slice %14 {offsets = [0, 2], sizes = [8, 2], strides = [1, 1]} : vector<8x4xf32> to vector<8x2xf32>
    %17 = arith.maximumf %15, %16 : vector<8x2xf32>
    %18 = tpu.concatenate %17, %17 in 1 : vector<8x2xf32>, vector<8x2xf32> -> vector<8x4xf32>
    %19 = arith.subf %14, %18 : vector<8x4xf32>
    %20 = math.exp %19 : vector<8x4xf32>
    %21 = vector.extract_strided_slice %20 {offsets = [0, 0], sizes = [8, 2], strides = [1, 1]} : vector<8x4xf32> to vector<8x2xf32>
    %22 = vector.extract_strided_slice %20 {offsets = [0, 2], sizes = [8, 2], strides = [1, 1]} : vector<8x4xf32> to vector<8x2xf32>
    %23 = arith.addf %21, %22 : vector<8x2xf32>
    %24 = tpu.reciprocal %23 {approx = true} : vector<8x2xf32> -> vector<8x2xf32>
    %25 = tpu.concatenate %24, %24 in 1 : vector<8x2xf32>, vector<8x2xf32> -> vector<8x4xf32>
    %26 = arith.mulf %20, %25 : vector<8x4xf32>
    %c0_11 = arith.constant 0 : index
    %c0_12 = arith.constant 0 : index
    %27 = vector.load %arg6[%c0_11, %c0_12] : memref<4x32xf32, #tpu.memory_space<vmem>>, vector<4x32xf32>
    %cst_13 = arith.constant dense<0.000000e+00> : vector<8x32xf32>
    %28 = tpu.matmul %26, %27, %cst_13 {dimension_numbers = #tpu.dot_dimension_numbers<[1], [0], [0], [1], [0, 0, 1, 1], [], []>} : vector<8x4xf32>, vector<4x32xf32>, vector<8x32xf32> -> vector<8x32xf32>
    %29 = tpu.concatenate %8, %8 in 1 : vector<8x16xf32>, vector<8x16xf32> -> vector<8x32xf32>
    %30 = arith.mulf %28, %29 : vector<8x32xf32>
    %c0_14 = arith.constant 0 : index
    %c0_15 = arith.constant 0 : index
    %31 = vector.load %arg7[%c0_14, %c0_15] : memref<32x128xf32, #tpu.memory_space<vmem>>, vector<32x128xf32>
    %cst_16 = arith.constant dense<0.000000e+00> : vector<8x128xf32>
    %32 = tpu.matmul %30, %31, %cst_16 {dimension_numbers = #tpu.dot_dimension_numbers<[1], [0], [0], [1], [0, 0, 1, 1], [], []>} : vector<8x32xf32>, vector<32x128xf32>, vector<8x128xf32> -> vector<8x128xf32>
    %c0_17 = arith.constant 0 : index
    %c0_18 = arith.constant 0 : index
    %33 = vector.load %arg8[%c0_17, %c0_18] : memref<8x128xf32, #tpu.memory_space<vmem>>, vector<8x128xf32>
    tpu.vector_store %arg8[%c0_17, %c0_18], %32 {strides = array<i32>} : memref<8x128xf32, #tpu.memory_space<vmem>>, vector<8x128xf32>,
    return
  }
  func.func @transform_0(%arg0: i32) -> (i32, i32) {
    %c0_i32 = arith.constant 0 : i32
    %c0_i32_0 = arith.constant 0 : i32
    return %arg0, %c0_i32 : i32, i32
  }
  func.func @transform_1(%arg0: i32) -> (i32, i32) {
    %c0_i32 = arith.constant 0 : i32
    %c0_i32_0 = arith.constant 0 : i32
    %c0_i32_1 = arith.constant 0 : i32
    return %c0_i32, %c0_i32_0 : i32, i32
  }
  func.func @transform_2(%arg0: i32) -> (i32, i32) {
    %c0_i32 = arith.constant 0 : i32
    %c0_i32_0 = arith.constant 0 : i32
    %c0_i32_1 = arith.constant 0 : i32
    return %c0_i32, %c0_i32_0 : i32, i32
  }
  func.func @transform_3(%arg0: i32) -> (i32, i32) {
    %c0_i32 = arith.constant 0 : i32
    %c0_i32_0 = arith.constant 0 : i32
    %c0_i32_1 = arith.constant 0 : i32
    return %c0_i32, %c0_i32_0 : i32, i32
  }
  func.func @transform_4(%arg0: i32) -> (i32, i32) {
    %c0_i32 = arith.constant 0 : i32
    %c0_i32_0 = arith.constant 0 : i32
    %c0_i32_1 = arith.constant 0 : i32
    return %c0_i32, %c0_i32_0 : i32, i32
  }
  func.func @transform_5(%arg0: i32) -> (i32, i32) {
    %c0_i32 = arith.constant 0 : i32
    %c0_i32_0 = arith.constant 0 : i32
    %c0_i32_1 = arith.constant 0 : i32
    return %c0_i32, %c0_i32_0 : i32, i32
  }
  func.func @transform_6(%arg0: i32) -> (i32, i32) {
    %c0_i32 = arith.constant 0 : i32
    %c0_i32_0 = arith.constant 0 : i32
    %c0_i32_1 = arith.constant 0 : i32
    return %c0_i32, %c0_i32_0 : i32, i32
  }
  func.func @transform_7(%arg0: i32) -> (i32, i32) {
    %c0_i32 = arith.constant 0 : i32
    %c0_i32_0 = arith.constant 0 : i32
    return %arg0, %c0_i32 : i32, i32
  }
}

</mosaic_0001>

<llo_original>
// kernel: tpu_custom_call.1
$region0: #{tpu_custom_call.1}
  #allocation0 [shape = 'u32[]', space=smem, size = 0x4, offset = 0x4, fixed_abs, tag = 'smem constant byte address 0x4 - core index']
  #allocation1 [shape = 'u32[144,128]{1,0:T(1,128)}', space=vmem, size = 0x12000, scoped, tag = 'internal scratch']
  %s0 = inlined_call_operand.hbm [shape: f32[16,32], index: 0, kind: input, shape index: {}]
  %s1 = inlined_call_operand.vmem [shape: f32[32,80], index: 1, kind: input, shape index: {}]
  %s2 = inlined_call_operand.vmem [shape: f32[1,80], index: 2, kind: input, shape index: {}]
  %s3 = inlined_call_operand.vmem [shape: f32[32,64], index: 3, kind: input, shape index: {}]
  %s4 = inlined_call_operand.vmem [shape: f32[64,4], index: 4, kind: input, shape index: {}]
  %s5 = inlined_call_operand.vmem [shape: f32[4,32], index: 5, kind: input, shape index: {}]
  %s6 = inlined_call_operand.hbm [shape: f32[32,128], index: 6, kind: input, shape index: {}]
  %s7 = inlined_call_operand.hbm [shape: f32[16,128], index: 7, kind: output, shape index: {}]
  %s8 = sld [smem:[#allocation0]]
  $region69: #{tpu_custom_call.1} parent=0
    _
  %s10 = ssub.s32 1, %s8
  %s11 = scalar_select 0, %s10, %s8
  $region1: #{tpu_custom_call.1} parent=0
    #allocation2 [shape = 'u8[8192]{0}', space=vmem, size = 0x2000, scoped, tag = 'input window, operand 0']
    #allocation3 [shape = 's32[2]{0}', space=sflag, size = 0x8, scoped, tag = 'scoped memory for tpu_custom_call.1']
    #allocation4 [shape = 's32[2]{0}', space=sflag, size = 0x8, scoped, tag = 'scoped memory for tpu_custom_call.1']
    #allocation5 [shape = 'u8[16384]{0}', space=vmem, size = 0x4000, scoped, tag = 'input window, operand 6, single buffered']
    #allocation6 [shape = 's32[1]{0}', space=sflag, size = 0x4, scoped, tag = 'scoped memory for tpu_custom_call.1']
    #allocation7 [shape = 'u8[8192]{0}', space=vmem, size = 0x2000, scoped, tag = 'output window, operand 0']
    %12 = vsyncpa [#allocation3], 0
    %s13 = scalar_lea.sflag [#allocation3], 1
    %14 = vsyncpa %s13, 0
    %15 = vsyncpa [#allocation6], 0
    %16 = vsyncpa [#allocation4], 0
    %s17 = scalar_lea.sflag [#allocation4], 1
    %18 = vsyncpa %s17, 0
    loop: start=0, step=1, limit=4
    $region2: #{tpu_custom_call.1} parent=1 // loop_pre_header
      _
    $region3: #{tpu_custom_call.1} parent=1 // loop_header
      %s20 = sphi 0, %s24
      %p21 = scmp.ge.s32.totalorder %s20, 4
      %s30 = sphi 0, %s32
      %s33 = sphi 0, %s30
      %s34 = sphi 0, %s33
      %s50 = sphi 0, %s34
      %s54 = sphi 0, %s54
      %s56 = sphi 0, %s54
      %s57 = sphi 0, %s56
      %s71 = sphi 0, %s57
      %s75 = sphi 0, %s75
      %s77 = sphi 0, %s75
      %s78 = sphi 0, %s77
      %s92 = sphi 0, %s78
      %s96 = sphi 0, %s96
      %s98 = sphi 0, %s96
      %s99 = sphi 0, %s98
      %s113 = sphi 0, %s99
      %s117 = sphi 0, %s117
      %s119 = sphi 0, %s117
      %s120 = sphi 0, %s119
      %s134 = sphi 0, %s120
      %s138 = sphi 0, %s138
      %s140 = sphi 0, %s138
      %s141 = sphi 0, %s140
      %s155 = sphi 0, %s141
      %s159 = sphi 0, %s159
      %s161 = sphi 0, %s159
      %s162 = sphi 0, %s161
      %s176 = sphi 0, %s162
      %s182 = sphi 0, %s184
      %s185 = sphi 0, %s182
      %s186 = sphi 0, %s185
      %s202 = sphi 0, %s186
    $region4: #{tpu_custom_call.1} parent=1 // loop_header_branch
      %23 = sbr.rel (%p21) target = $region8
    $region5: #{tpu_custom_call.1} parent=1 // loop_body
      %s25 = ssub.s32 %s20, 1
      %s26 = ssub.s32 %s20, 2
      %s27 = sadd.s32 %s20, 1
      %s28 = ssub.s32 %s20, %s27
      %p29 = scmp.eq.s32.totalorder %s28, 0
      %s31 = sadd.s32 %s30, 1
      %s32 = scalar_select %p29, %s30, %s31
      %p35 = pneg %p29
      %p36 = scmp.eq.s32.totalorder %s20, 1
      %p37 = por %p35, %p36
      %p38 = scmp.ne.s32.totalorder %s30, %s33
      %p39 = scmp.eq.s32.totalorder %s20, 0
      %p40 = por %p38, %p39
      %p41 = scmp.ne.s32.totalorder %s30, %s33
      %p42 = scmp.eq.s32.totalorder %s25, 1
      %p43 = por %p41, %p42
      %p44 = scmp.ne.s32.totalorder %s33, %s34
      %p45 = scmp.eq.s32.totalorder %s25, 0
      %p46 = por %p44, %p45
      %p47 = scmp.ne.s32.totalorder %s33, %s34
      %p48 = scmp.eq.s32.totalorder %s26, 1
      %p49 = por %p47, %p48
      %p51 = scmp.ne.s32.totalorder %s34, %s50
      %p52 = scmp.eq.s32.totalorder %s26, 0
      %p53 = por %p51, %p52
      %s55 = sadd.s32 %s54, 1
      %p58 = scmp.eq.s32.totalorder %s20, 1
      %p59 = scmp.ne.s32.totalorder %s54, %s56
      %p60 = scmp.eq.s32.totalorder %s20, 0
      %p61 = por %p59, %p60
      %p62 = scmp.ne.s32.totalorder %s54, %s56
      %p63 = scmp.eq.s32.totalorder %s25, 1
      %p64 = por %p62, %p63
      %p65 = scmp.ne.s32.totalorder %s56, %s57
      %p66 = scmp.eq.s32.totalorder %s25, 0
      %p67 = por %p65, %p66
      %p68 = scmp.ne.s32.totalorder %s56, %s57
      %p69 = scmp.eq.s32.totalorder %s26, 1
      %p70 = por %p68, %p69
      %p72 = scmp.ne.s32.totalorder %s57, %s71
      %p73 = scmp.eq.s32.totalorder %s26, 0
      %p74 = por %p72, %p73
      %s76 = sadd.s32 %s75, 1
      %p79 = scmp.eq.s32.totalorder %s20, 1
      %p80 = scmp.ne.s32.totalorder %s75, %s77
      %p81 = scmp.eq.s32.totalorder %s20, 0
      %p82 = por %p80, %p81
      %p83 = scmp.ne.s32.totalorder %s75, %s77
      %p84 = scmp.eq.s32.totalorder %s25, 1
      %p85 = por %p83, %p84
      %p86 = scmp.ne.s32.totalorder %s77, %s78
      %p87 = scmp.eq.s32.totalorder %s25, 0
      %p88 = por %p86, %p87
      %p89 = scmp.ne.s32.totalorder %s77, %s78
      %p90 = scmp.eq.s32.totalorder %s26, 1
      %p91 = por %p89, %p90
      %p93 = scmp.ne.s32.totalorder %s78, %s92
      %p94 = scmp.eq.s32.totalorder %s26, 0
      %p95 = por %p93, %p94
      %s97 = sadd.s32 %s96, 1
      %p100 = scmp.eq.s32.totalorder %s20, 1
      %p101 = scmp.ne.s32.totalorder %s96, %s98
      %p102 = scmp.eq.s32.totalorder %s20, 0
      %p103 = por %p101, %p102
      %p104 = scmp.ne.s32.totalorder %s96, %s98
      %p105 = scmp.eq.s32.totalorder %s25, 1
      %p106 = por %p104, %p105
      %p107 = scmp.ne.s32.totalorder %s98, %s99
      %p108 = scmp.eq.s32.totalorder %s25, 0
      %p109 = por %p107, %p108
      %p110 = scmp.ne.s32.totalorder %s98, %s99
      %p111 = scmp.eq.s32.totalorder %s26, 1
      %p112 = por %p110, %p111
      %p114 = scmp.ne.s32.totalorder %s99, %s113
      %p115 = scmp.eq.s32.totalorder %s26, 0
      %p116 = por %p114, %p115
      %s118 = sadd.s32 %s117, 1
      %p121 = scmp.eq.s32.totalorder %s20, 1
      %p122 = scmp.ne.s32.totalorder %s117, %s119
      %p123 = scmp.eq.s32.totalorder %s20, 0
      %p124 = por %p122, %p123
      %p125 = scmp.ne.s32.totalorder %s117, %s119
      %p126 = scmp.eq.s32.totalorder %s25, 1
      %p127 = por %p125, %p126
      %p128 = scmp.ne.s32.totalorder %s119, %s120
      %p129 = scmp.eq.s32.totalorder %s25, 0
      %p130 = por %p128, %p129
      %p131 = scmp.ne.s32.totalorder %s119, %s120
      %p132 = scmp.eq.s32.totalorder %s26, 1
      %p133 = por %p131, %p132
      %p135 = scmp.ne.s32.totalorder %s120, %s134
      %p136 = scmp.eq.s32.totalorder %s26, 0
      %p137 = por %p135, %p136
      %s139 = sadd.s32 %s138, 1
      %p142 = scmp.eq.s32.totalorder %s20, 1
      %p143 = scmp.ne.s32.totalorder %s138, %s140
      %p144 = scmp.eq.s32.totalorder %s20, 0
      %p145 = por %p143, %p144
      %p146 = scmp.ne.s32.totalorder %s138, %s140
      %p147 = scmp.eq.s32.totalorder %s25, 1
      %p148 = por %p146, %p147
      %p149 = scmp.ne.s32.totalorder %s140, %s141
      %p150 = scmp.eq.s32.totalorder %s25, 0
      %p151 = por %p149, %p150
      %p152 = scmp.ne.s32.totalorder %s140, %s141
      %p153 = scmp.eq.s32.totalorder %s26, 1
      %p154 = por %p152, %p153
      %p156 = scmp.ne.s32.totalorder %s141, %s155
      %p157 = scmp.eq.s32.totalorder %s26, 0
      %p158 = por %p156, %p157
      %s160 = sadd.s32 %s159, 1
      %p163 = scmp.eq.s32.totalorder %s20, 1
      %p164 = scmp.ne.s32.totalorder %s159, %s161
      %p165 = scmp.eq.s32.totalorder %s20, 0
      %p166 = por %p164, %p165
      %p167 = scmp.ne.s32.totalorder %s159, %s161
      %p168 = scmp.eq.s32.totalorder %s25, 1
      %p169 = por %p167, %p168
      %p170 = scmp.ne.s32.totalorder %s161, %s162
      %p171 = scmp.eq.s32.totalorder %s25, 0
      %p172 = por %p170, %p171
      %p173 = scmp.ne.s32.totalorder %s161, %s162
      %p174 = scmp.eq.s32.totalorder %s26, 1
      %p175 = por %p173, %p174
      %p177 = scmp.ne.s32.totalorder %s162, %s176
      %p178 = scmp.eq.s32.totalorder %s26, 0
      %p179 = por %p177, %p178
      %s180 = ssub.s32 %s20, %s27
      %p181 = scmp.eq.s32.totalorder %s180, 0
      %s183 = sadd.s32 %s182, 1
      %s184 = scalar_select %p181, %s182, %s183
      %p187 = pneg %p181
      %p188 = scmp.eq.s32.totalorder %s20, 1
      %p189 = por %p187, %p188
      %p190 = scmp.ne.s32.totalorder %s182, %s185
      %p191 = scmp.eq.s32.totalorder %s20, 0
      %p192 = por %p190, %p191
      %p193 = scmp.ne.s32.totalorder %s182, %s185
      %p194 = scmp.eq.s32.totalorder %s25, 1
      %p195 = por %p193, %p194
      %p196 = scmp.ne.s32.totalorder %s185, %s186
      %p197 = scmp.eq.s32.totalorder %s25, 0
      %p198 = por %p196, %p197
      %p199 = scmp.ne.s32.totalorder %s185, %s186
      %p200 = scmp.eq.s32.totalorder %s26, 1
      %p201 = por %p199, %p200
      %p203 = scmp.ne.s32.totalorder %s186, %s202
      %p204 = scmp.eq.s32.totalorder %s26, 0
      %p205 = por %p203, %p204
      %p206 = scmp.le.s32.totalorder 1, %s20
      %p207 = scmp.lt.s32.totalorder %s20, 3
      %p208 = pnand %p206, %p207
      %p209 = pneg %p208
      // Predicated region
      $region9: #{tpu_custom_call.1} parent=5 // pred_check
        _
      $region10: #{tpu_custom_call.1} parent=5 // pred_check_branch
        %211 = sbr.rel (%p208) target = $region12
      $region11: #{tpu_custom_call.1} parent=5 // pred_region
        %s212 = ssub.s32 %s20, 1
        // Predicated region
        $region13: #{tpu_custom_call.1} parent=11 // pred_check
          %p213 = pneg %p67
        $region14: #{tpu_custom_call.1} parent=11 // pred_check_branch
          %215 = sbr.rel (%p213) target = $region16
        $region15: #{tpu_custom_call.1} parent=11 // pred_region
          _
        $region16: #{tpu_custom_call.1} parent=11 // pred_fallthru
          _
        // Predicated region
        $region17: #{tpu_custom_call.1} parent=11 // pred_check
          %p216 = pneg %p88
        $region18: #{tpu_custom_call.1} parent=11 // pred_check_branch
          %218 = sbr.rel (%p216) target = $region20
        $region19: #{tpu_custom_call.1} parent=11 // pred_region
          _
        $region20: #{tpu_custom_call.1} parent=11 // pred_fallthru
          _
        // Predicated region
        $region21: #{tpu_custom_call.1} parent=11 // pred_check
          %p219 = pneg %p109
        $region22: #{tpu_custom_call.1} parent=11 // pred_check_branch
          %221 = sbr.rel (%p219) target = $region24
        $region23: #{tpu_custom_call.1} parent=11 // pred_region
          _
        $region24: #{tpu_custom_call.1} parent=11 // pred_fallthru
          _
        // Predicated region
        $region25: #{tpu_custom_call.1} parent=11 // pred_check
          %p222 = pneg %p130
        $region26: #{tpu_custom_call.1} parent=11 // pred_check_branch
          %224 = sbr.rel (%p222) target = $region28
        $region27: #{tpu_custom_call.1} parent=11 // pred_region
          _
        $region28: #{tpu_custom_call.1} parent=11 // pred_fallthru
          _
        // Predicated region
        $region29: #{tpu_custom_call.1} parent=11 // pred_check
          %p225 = pneg %p151
        $region30: #{tpu_custom_call.1} parent=11 // pred_check_branch
          %227 = sbr.rel (%p225) target = $region32
        $region31: #{tpu_custom_call.1} parent=11 // pred_region
          _
        $region32: #{tpu_custom_call.1} parent=11 // pred_fallthru
          _
        // Predicated region
        $region33: #{tpu_custom_call.1} parent=11 // pred_check
          %p228 = pneg %p172
        $region34: #{tpu_custom_call.1} parent=11 // pred_check_branch
          %230 = sbr.rel (%p228) target = $region36
        $region35: #{tpu_custom_call.1} parent=11 // pred_region
          %s232 = ssub.s32 512, 512
          %233 = vsyncadd [#allocation6], %s232
          %s234 = sshll.u32 [#allocation5], 4
          %s235 = int_to_ptr.vmem [resolvable:$true] %s234
          %240 = dma.hbm_to_vmem [thread:$0]  %s6, 512, %s235, [#allocation6], 128, 128, 8
        $region36: #{tpu_custom_call.1} parent=11 // pred_fallthru
          _
      $region12: #{tpu_custom_call.1} parent=5 // pred_fallthru
        _
      %p241 = scmp.lt.s32.totalorder %s20, 2
      // Predicated region
      $region37: #{tpu_custom_call.1} parent=5 // pred_check
        %p242 = pneg %p241
      $region38: #{tpu_custom_call.1} parent=5 // pred_check_branch
        %244 = sbr.rel (%p242) target = $region40
      $region39: #{tpu_custom_call.1} parent=5 // pred_region
        // Predicated region
        $region41: #{tpu_custom_call.1} parent=39 // pred_check
          %p245 = pneg %p40
        $region42: #{tpu_custom_call.1} parent=39 // pred_check_branch
          %247 = sbr.rel (%p245) target = $region44
        $region43: #{tpu_custom_call.1} parent=39 // pred_region
          %s248 = sand.u32 %s30, 1
          %s249 = scalar_lea.sflag [#allocation3], %s248
          %s250 = sand.u32 %s30, 1
          %s251 = smul.addr %s250, 8
          %s252 = scalar_lea.vmem [#allocation2], %s251
          %s254 = ssub.s32 128, 128
          %255 = vsyncadd %s249, %s254
          %s256 = smul.addr %s20, 128
          %s257 = scalar_lea.hbm %s0, %s256
          %s259 = sshll.u32 %s252, 4
          %s260 = int_to_ptr.vmem [resolvable:$true] %s259
          %262 = dma.hbm_to_vmem [thread:$0]  %s257, 128, %s260, %s249
        $region44: #{tpu_custom_call.1} parent=39 // pred_fallthru
          _
      $region40: #{tpu_custom_call.1} parent=5 // pred_fallthru
        _
      %p263 = scmp.le.s32.totalorder 1, %s20
      %p264 = scmp.lt.s32.totalorder %s20, 3
      %p265 = pnand %p263, %p264
      %p266 = pneg %p265
      // Predicated region
      $region45: #{tpu_custom_call.1} parent=5 // pred_check
        _
      $region46: #{tpu_custom_call.1} parent=5 // pred_check_branch
        %268 = sbr.rel (%p265) target = $region48
      $region47: #{tpu_custom_call.1} parent=5 // pred_region
        %s269 = ssub.s32 %s20, 1
        %s270 = sand.u32 %s33, 1
        %s271 = scalar_lea.sflag [#allocation3], %s270
        %s272 = sand.u32 %s33, 1
        %s273 = smul.addr %s272, 8
        %s274 = scalar_lea.vmem [#allocation2], %s273
        // Predicated region
        $region49: #{tpu_custom_call.1} parent=47 // pred_check
          %p275 = pneg %p46
        $region50: #{tpu_custom_call.1} parent=47 // pred_check_branch
          %277 = sbr.rel (%p275) target = $region52
        $region51: #{tpu_custom_call.1} parent=47 // pred_region
          %278 = dma.done %s271, 128
        $region52: #{tpu_custom_call.1} parent=47 // pred_fallthru
          _
        // Predicated region
        $region53: #{tpu_custom_call.1} parent=47 // pred_check
          %p279 = pneg %p172
        $region54: #{tpu_custom_call.1} parent=47 // pred_check_branch
          %281 = sbr.rel (%p279) target = $region56
        $region55: #{tpu_custom_call.1} parent=47 // pred_region
          %282 = dma.done [#allocation6], 512
        $region56: #{tpu_custom_call.1} parent=47 // pred_fallthru
          _
        %s283 = sand.u32 %s33, 1
        %s284 = scalar_lea.sflag [#allocation3], %s283
        %s285 = sand.u32 %s33, 1
        %s286 = smul.addr %s285, 8
        %s287 = scalar_lea.vmem [#allocation2], %s286
        %p288 = pneg %p46
        %p289 = pneg %p43
        %p290 = pneg %p67
        %p291 = pneg %p64
        %p292 = pneg %p88
        %p293 = pneg %p85
        %p294 = pneg %p109
        %p295 = pneg %p106
        %p296 = pneg %p130
        %p297 = pneg %p127
        %p298 = pneg %p151
        %p299 = pneg %p148
        %p300 = pneg %p172
        %p301 = pneg %p169
        %p302 = pneg %p198
        %p303 = pneg %p195
        %s304 = sand.u32 %s185, 1
        %s305 = scalar_lea.sflag [#allocation4], %s304
        %s306 = sand.u32 %s185, 1
        %s307 = smul.addr %s306, 8
        %s308 = scalar_lea.vmem [#allocation7], %s307
        %v309 = vld [vmem:[%s274] sm:$0xff]
        %v310 = vld [vmem:[%s1] sm:$0xff]
        %v311 = vld [vmem:[%s1 + $0x8] sm:$0xff]
        %v312 = vld [vmem:[%s1 + $0x10] sm:$0xff]
        %v313 = vld [vmem:[%s1 + $0x18] sm:$0xff]
        %v314 = vld [vmem:[%s2] sm:$0x1]
        %v316 = vlaneseq
        %v317 = vshrl.u32 %v316, 7
        %v318 = vsub.s32 0, %v317
        %v319 = vrot.slane %v314, %v318
        %vm321 = vcmask 261120
        %v323 = vsel %vm321, %v309, 0
        %325 = vmatprep.subr.mxu0 0.0
        %326 = vmatpush1.msra.mxu0 0.0
        %327 = vmatprep.subr.mxu0 0.0
        %328 = vmatpush1.msra.mxu0 0.0
        %329 = vmatprep.subr.mxu0 0.0
        %330 = vmatpush1.msra.mxu0 0.0
        %331 = vmatprep.subr.mxu0 0.0
        %332 = vmatpush1.msra.mxu0 0.0
        %333 = vmatprep.subr.mxu0 0.0
        %334 = vmatpush1.msra.mxu0 0.0
        %335 = vmatprep.subr.mxu0 0.0
        %336 = vmatpush1.msra.mxu0 0.0
        %337 = vmatprep.subr.mxu0 0.0
        %338 = vmatpush1.msra.mxu0 0.0
        %339 = vmatprep.subr.mxu0 0.0
        %340 = vmatpush1.msra.mxu0 0.0
        %341 = vmatprep.subr.mxu0 0.0
        %342 = vmatpush1.msra.mxu0 0.0
        %343 = vmatprep.subr.mxu0 0.0
        %344 = vmatpush1.msra.mxu0 0.0
        %345 = vmatprep.subr.mxu0 0.0
        %346 = vmatpush1.msra.mxu0 0.0
        %347 = vmatprep.subr.mxu0 0.0
        %348 = vmatpush1.msra.mxu0 0.0
        %349 = vmatprep.subr.mxu0 0.0
        %350 = vmatpush1.msra.mxu0 %v313
        %351 = vmatprep.subr.mxu0 0.0
        %352 = vmatpush1.msra.mxu0 %v312
        %353 = vmatprep.subr.mxu0 0.0
        %354 = vmatpush1.msra.mxu0 %v311
        %355 = vmatprep.subr.mxu0 0.0
        %356 = vmatpush1.msra.mxu0 %v310
        %357 = vmatprep.subr.mxu0 0.0
        %358 = vmatpush2.msra.mxu0 0.0
        %359 = vmatprep.subr.mxu0 0.0
        %360 = vmatpush2.msra.mxu0 0.0
        %361 = vmatprep.subr.mxu0 0.0
        %362 = vmatpush2.msra.mxu0 0.0
        %363 = vmatprep.subr.mxu0 0.0
        %364 = vmatpush2.msra.mxu0 0.0
        %365 = vmatprep.subr.mxu0 0.0
        %366 = vmatpush2.msra.mxu0 0.0
        %367 = vmatprep.subr.mxu0 0.0
        %368 = vmatpush2.msra.mxu0 0.0
        %369 = vmatprep.subr.mxu0 0.0
        %370 = vmatpush2.msra.mxu0 0.0
        %371 = vmatprep.subr.mxu0 0.0
        %372 = vmatpush2.msra.mxu0 0.0
        %373 = vmatprep.subr.mxu0 0.0
        %374 = vmatpush2.msra.mxu0 0.0
        %375 = vmatprep.subr.mxu0 0.0
        %376 = vmatpush2.msra.mxu0 0.0
        %377 = vmatprep.subr.mxu0 0.0
        %378 = vmatpush2.msra.mxu0 0.0
        %379 = vmatprep.subr.mxu0 0.0
        %380 = vmatpush2.msra.mxu0 0.0
        %381 = vmatprep.subr.mxu0 0.0
        %382 = vmatpush2.msra.mxu0 0.0
        %383 = vmatprep.subr.mxu0 0.0
        %384 = vmatpush2.msra.mxu0 0.0
        %385 = vmatprep.subr.mxu0 0.0
        %386 = vmatpush2.msra.mxu0 0.0
        %387 = vmatprep.subr.mxu0 0.0
        %388 = vmatpush2.msra.mxu0 0.0
        %389 = vmatprep.mubr.f32.mxu0 0.0
        %390 = vmatmul.mubr.f32.gmra.mxu0 %v323
        %v391 = vpop.f32.mrf.mxu0
        %v392 = vadd.f32 %v319, %v391
        %v393 = vpop.f32.mrf.mxu0
        %394 = vdwg.mxu0
        %v395 = vld [vmem:[%s3] sm:$0xff]
        %v396 = vld [vmem:[%s3 + $0x8] sm:$0xff]
        %v397 = vld [vmem:[%s3 + $0x10] sm:$0xff]
        %v398 = vld [vmem:[%s3 + $0x18] sm:$0xff]
        %v400 = vsel %vm321, %v392, 0
        %402 = vmatprep.subr.mxu0 0.0
        %403 = vmatpush1.msra.mxu0 0.0
        %404 = vmatprep.subr.mxu0 0.0
        %405 = vmatpush1.msra.mxu0 0.0
        %406 = vmatprep.subr.mxu0 0.0
        %407 = vmatpush1.msra.mxu0 0.0
        %408 = vmatprep.subr.mxu0 0.0
        %409 = vmatpush1.msra.mxu0 0.0
        %410 = vmatprep.subr.mxu0 0.0
        %411 = vmatpush1.msra.mxu0 0.0
        %412 = vmatprep.subr.mxu0 0.0
        %413 = vmatpush1.msra.mxu0 0.0
        %414 = vmatprep.subr.mxu0 0.0
        %415 = vmatpush1.msra.mxu0 0.0
        %416 = vmatprep.subr.mxu0 0.0
        %417 = vmatpush1.msra.mxu0 0.0
        %418 = vmatprep.subr.mxu0 0.0
        %419 = vmatpush1.msra.mxu0 0.0
        %420 = vmatprep.subr.mxu0 0.0
        %421 = vmatpush1.msra.mxu0 0.0
        %422 = vmatprep.subr.mxu0 0.0
        %423 = vmatpush1.msra.mxu0 0.0
        %424 = vmatprep.subr.mxu0 0.0
        %425 = vmatpush1.msra.mxu0 0.0
        %426 = vmatprep.subr.mxu0 0.0
        %427 = vmatpush1.msra.mxu0 %v398
        %428 = vmatprep.subr.mxu0 0.0
        %429 = vmatpush1.msra.mxu0 %v397
        %430 = vmatprep.subr.mxu0 0.0
        %431 = vmatpush1.msra.mxu0 %v396
        %432 = vmatprep.subr.mxu0 0.0
        %433 = vmatpush1.msra.mxu0 %v395
        %434 = vmatprep.subr.mxu0 0.0
        %435 = vmatpush2.msra.mxu0 0.0
        %436 = vmatprep.subr.mxu0 0.0
        %437 = vmatpush2.msra.mxu0 0.0
        %438 = vmatprep.subr.mxu0 0.0
        %439 = vmatpush2.msra.mxu0 0.0
        %440 = vmatprep.subr.mxu0 0.0
        %441 = vmatpush2.msra.mxu0 0.0
        %442 = vmatprep.subr.mxu0 0.0
        %443 = vmatpush2.msra.mxu0 0.0
        %444 = vmatprep.subr.mxu0 0.0
        %445 = vmatpush2.msra.mxu0 0.0
        %446 = vmatprep.subr.mxu0 0.0
        %447 = vmatpush2.msra.mxu0 0.0
        %448 = vmatprep.subr.mxu0 0.0
        %449 = vmatpush2.msra.mxu0 0.0
        %450 = vmatprep.subr.mxu0 0.0
        %451 = vmatpush2.msra.mxu0 0.0
        %452 = vmatprep.subr.mxu0 0.0
        %453 = vmatpush2.msra.mxu0 0.0
        %454 = vmatprep.subr.mxu0 0.0
        %455 = vmatpush2.msra.mxu0 0.0
        %456 = vmatprep.subr.mxu0 0.0
        %457 = vmatpush2.msra.mxu0 0.0
        %458 = vmatprep.subr.mxu0 0.0
        %459 = vmatpush2.msra.mxu0 0.0
        %460 = vmatprep.subr.mxu0 0.0
        %461 = vmatpush2.msra.mxu0 0.0
        %462 = vmatprep.subr.mxu0 0.0
        %463 = vmatpush2.msra.mxu0 0.0
        %464 = vmatprep.subr.mxu0 0.0
        %465 = vmatpush2.msra.mxu0 0.0
        %466 = vmatprep.mubr.f32.mxu0 0.0
        %467 = vmatmul.mubr.f32.gmra.mxu0 %v400
        %v468 = vpop.f32.mrf.mxu0
        %v469 = vadd.f32 0.0, %v468
        %v470 = vpop.f32.mrf.mxu0
        %471 = vdwg.mxu0
        %472 = vrot.lane.b32.xlu0 %v392, 96
        %v473 = vpop.permute.xlu0 %472
        %v475 = vsel %vm321, %v473, %v392
        %v476 = vmul.f32 %v469, %v475
        %v477 = vld [vmem:[%s4] sm:$0xff]
        %v478 = vld [vmem:[%s4 + $0x8] sm:$0xff]
        %v479 = vld [vmem:[%s4 + $0x10] sm:$0xff]
        %v480 = vld [vmem:[%s4 + $0x18] sm:$0xff]
        %v481 = vld [vmem:[%s4 + $0x20] sm:$0xff]
        %v482 = vld [vmem:[%s4 + $0x28] sm:$0xff]
        %v483 = vld [vmem:[%s4 + $0x30] sm:$0xff]
        %v484 = vld [vmem:[%s4 + $0x38] sm:$0xff]
        %vm485 = vcmask 523264
        %v487 = vsel %vm485, %v476, 0
        %489 = vmatprep.subr.mxu0 0.0
        %490 = vmatpush1.msra.mxu0 0.0
        %491 = vmatprep.subr.mxu0 0.0
        %492 = vmatpush1.msra.mxu0 0.0
        %493 = vmatprep.subr.mxu0 0.0
        %494 = vmatpush1.msra.mxu0 0.0
        %495 = vmatprep.subr.mxu0 0.0
        %496 = vmatpush1.msra.mxu0 0.0
        %497 = vmatprep.subr.mxu0 0.0
        %498 = vmatpush1.msra.mxu0 0.0
        %499 = vmatprep.subr.mxu0 0.0
        %500 = vmatpush1.msra.mxu0 0.0
        %501 = vmatprep.subr.mxu0 0.0
        %502 = vmatpush1.msra.mxu0 0.0
        %503 = vmatprep.subr.mxu0 0.0
        %504 = vmatpush1.msra.mxu0 0.0
        %505 = vmatprep.subr.mxu0 0.0
        %506 = vmatpush1.msra.mxu0 %v484
        %507 = vmatprep.subr.mxu0 0.0
        %508 = vmatpush1.msra.mxu0 %v483
        %509 = vmatprep.subr.mxu0 0.0
        %510 = vmatpush1.msra.mxu0 %v482
        %511 = vmatprep.subr.mxu0 0.0
        %512 = vmatpush1.msra.mxu0 %v481
        %513 = vmatprep.subr.mxu0 0.0
        %514 = vmatpush1.msra.mxu0 %v480
        %515 = vmatprep.subr.mxu0 0.0
        %516 = vmatpush1.msra.mxu0 %v479
        %517 = vmatprep.subr.mxu0 0.0
        %518 = vmatpush1.msra.mxu0 %v478
        %519 = vmatprep.subr.mxu0 0.0
        %520 = vmatpush1.msra.mxu0 %v477
        %521 = vmatprep.subr.mxu0 0.0
        %522 = vmatpush2.msra.mxu0 0.0
        %523 = vmatprep.subr.mxu0 0.0
        %524 = vmatpush2.msra.mxu0 0.0
        %525 = vmatprep.subr.mxu0 0.0
        %526 = vmatpush2.msra.mxu0 0.0
        %527 = vmatprep.subr.mxu0 0.0
        %528 = vmatpush2.msra.mxu0 0.0
        %529 = vmatprep.subr.mxu0 0.0
        %530 = vmatpush2.msra.mxu0 0.0
        %531 = vmatprep.subr.mxu0 0.0
        %532 = vmatpush2.msra.mxu0 0.0
        %533 = vmatprep.subr.mxu0 0.0
        %534 = vmatpush2.msra.mxu0 0.0
        %535 = vmatprep.subr.mxu0 0.0
        %536 = vmatpush2.msra.mxu0 0.0
        %537 = vmatprep.subr.mxu0 0.0
        %538 = vmatpush2.msra.mxu0 0.0
        %539 = vmatprep.subr.mxu0 0.0
        %540 = vmatpush2.msra.mxu0 0.0
        %541 = vmatprep.subr.mxu0 0.0
        %542 = vmatpush2.msra.mxu0 0.0
        %543 = vmatprep.subr.mxu0 0.0
        %544 = vmatpush2.msra.mxu0 0.0
        %545 = vmatprep.subr.mxu0 0.0
        %546 = vmatpush2.msra.mxu0 0.0
        %547 = vmatprep.subr.mxu0 0.0
        %548 = vmatpush2.msra.mxu0 0.0
        %549 = vmatprep.subr.mxu0 0.0
        %550 = vmatpush2.msra.mxu0 0.0
        %551 = vmatprep.subr.mxu0 0.0
        %552 = vmatpush2.msra.mxu0 0.0
        %553 = vmatprep.mubr.f32.mxu0 0.0
        %554 = vmatmul.mubr.f32.gmra.mxu0 %v487
        %v555 = vpop.f32.mrf.mxu0
        %v556 = vadd.f32 0.0, %v555
        %v557 = vpop.f32.mrf.mxu0
        %558 = vdwg.mxu0
        %560 = vrot.lane.b32.xlu0 %v556, 126
        %v561 = vpop.permute.xlu0 %560
        %v563 = vmax.f32 %v556, %v561
        %565 = vrot.lane.b32.xlu0 %v563, 2
        %v566 = vpop.permute.xlu0 %565
        %vm568 = vcmask 15360
        %v569 = vsel %vm568, %v563, %v566
        %v570 = vsub.f32 %v556, %v569
        %v571 = vmul.f32 %v570, 1.442695
        %v572 = vpow.pop %v571
        %574 = vrot.lane.b32.xlu0 %v572, 126
        %v575 = vpop.permute.xlu0 %574
        %v577 = vadd.f32 %v572, %v575
        %v578 = vrcp.pop %v577
        %580 = vrot.lane.b32.xlu0 %v578, 2
        %v581 = vpop.permute.xlu0 %580
        %v583 = vsel %vm568, %v578, %v581
        %v584 = vmul.f32 %v572, %v583
        %v585 = vld [vmem:[%s5] sm:$0xf]
        %vm586 = vcmask 31744
        %v588 = vsel %vm586, %v584, 0
        %vm590 = vcmask 1043456
        %v592 = vsel %vm590, %v585, 0
        %594 = vmatprep.subr.mxu0 0.0
        %595 = vmatpush1.msra.mxu0 0.0
        %596 = vmatprep.subr.mxu0 0.0
        %597 = vmatpush1.msra.mxu0 0.0
        %598 = vmatprep.subr.mxu0 0.0
        %599 = vmatpush1.msra.mxu0 0.0
        %600 = vmatprep.subr.mxu0 0.0
        %601 = vmatpush1.msra.mxu0 0.0
        %602 = vmatprep.subr.mxu0 0.0
        %603 = vmatpush1.msra.mxu0 0.0
        %604 = vmatprep.subr.mxu0 0.0
        %605 = vmatpush1.msra.mxu0 0.0
        %606 = vmatprep.subr.mxu0 0.0
        %607 = vmatpush1.msra.mxu0 0.0
        %608 = vmatprep.subr.mxu0 0.0
        %609 = vmatpush1.msra.mxu0 0.0
        %610 = vmatprep.subr.mxu0 0.0
        %611 = vmatpush1.msra.mxu0 0.0
        %612 = vmatprep.subr.mxu0 0.0
        %613 = vmatpush1.msra.mxu0 0.0
        %614 = vmatprep.subr.mxu0 0.0
        %615 = vmatpush1.msra.mxu0 0.0
        %616 = vmatprep.subr.mxu0 0.0
        %617 = vmatpush1.msra.mxu0 0.0
        %618 = vmatprep.subr.mxu0 0.0
        %619 = vmatpush1.msra.mxu0 0.0
        %620 = vmatprep.subr.mxu0 0.0
        %621 = vmatpush1.msra.mxu0 0.0
        %622 = vmatprep.subr.mxu0 0.0
        %623 = vmatpush1.msra.mxu0 0.0
        %624 = vmatprep.subr.mxu0 0.0
        %625 = vmatpush1.msra.mxu0 %v592
        %626 = vmatprep.subr.mxu0 0.0
        %627 = vmatpush2.msra.mxu0 0.0
        %628 = vmatprep.subr.mxu0 0.0
        %629 = vmatpush2.msra.mxu0 0.0
        %630 = vmatprep.subr.mxu0 0.0
        %631 = vmatpush2.msra.mxu0 0.0
        %632 = vmatprep.subr.mxu0 0.0
        %633 = vmatpush2.msra.mxu0 0.0
        %634 = vmatprep.subr.mxu0 0.0
        %635 = vmatpush2.msra.mxu0 0.0
        %636 = vmatprep.subr.mxu0 0.0
        %637 = vmatpush2.msra.mxu0 0.0
        %638 = vmatprep.subr.mxu0 0.0
        %639 = vmatpush2.msra.mxu0 0.0
        %640 = vmatprep.subr.mxu0 0.0
        %641 = vmatpush2.msra.mxu0 0.0
        %642 = vmatprep.subr.mxu0 0.0
        %643 = vmatpush2.msra.mxu0 0.0
        %644 = vmatprep.subr.mxu0 0.0
        %645 = vmatpush2.msra.mxu0 0.0
        %646 = vmatprep.subr.mxu0 0.0
        %647 = vmatpush2.msra.mxu0 0.0
        %648 = vmatprep.subr.mxu0 0.0
        %649 = vmatpush2.msra.mxu0 0.0
        %650 = vmatprep.subr.mxu0 0.0
        %651 = vmatpush2.msra.mxu0 0.0
        %652 = vmatprep.subr.mxu0 0.0
        %653 = vmatpush2.msra.mxu0 0.0
        %654 = vmatprep.subr.mxu0 0.0
        %655 = vmatpush2.msra.mxu0 0.0
        %656 = vmatprep.subr.mxu0 0.0
        %657 = vmatpush2.msra.mxu0 0.0
        %658 = vmatprep.mubr.f32.mxu0 0.0
        %659 = vmatmul.mubr.f32.gmra.mxu0 %v588
        %v660 = vpop.f32.mrf.mxu0
        %v661 = vadd.f32 0.0, %v660
        %v662 = vpop.f32.mrf.mxu0
        %663 = vdwg.mxu0
        %664 = vrot.lane.b32.xlu0 %v392, 64
        %v665 = vpop.permute.xlu0 %664
        %667 = vrot.lane.b32.xlu0 %v392, 80
        %v668 = vpop.permute.xlu0 %667
        %vm670 = vcmask 130048
        %v671 = vsel %vm670, %v665, %v668
        %v672 = vmul.f32 %v661, %v671
        %v673 = vld [vmem:[#allocation5] sm:$0xff]
        %v674 = vld [vmem:[#allocation5 + $0x8] sm:$0xff]
        %v675 = vld [vmem:[#allocation5 + $0x10] sm:$0xff]
        %v676 = vld [vmem:[#allocation5 + $0x18] sm:$0xff]
        %v678 = vsel %vm321, %v672, 0
        %680 = vmatprep.subr.mxu0 0.0
        %681 = vmatpush1.msra.mxu0 0.0
        %682 = vmatprep.subr.mxu0 0.0
        %683 = vmatpush1.msra.mxu0 0.0
        %684 = vmatprep.subr.mxu0 0.0
        %685 = vmatpush1.msra.mxu0 0.0
        %686 = vmatprep.subr.mxu0 0.0
        %687 = vmatpush1.msra.mxu0 0.0
        %688 = vmatprep.subr.mxu0 0.0
        %689 = vmatpush1.msra.mxu0 0.0
        %690 = vmatprep.subr.mxu0 0.0
        %691 = vmatpush1.msra.mxu0 0.0
        %692 = vmatprep.subr.mxu0 0.0
        %693 = vmatpush1.msra.mxu0 0.0
        %694 = vmatprep.subr.mxu0 0.0
        %695 = vmatpush1.msra.mxu0 0.0
        %696 = vmatprep.subr.mxu0 0.0
        %697 = vmatpush1.msra.mxu0 0.0
        %698 = vmatprep.subr.mxu0 0.0
        %699 = vmatpush1.msra.mxu0 0.0
        %700 = vmatprep.subr.mxu0 0.0
        %701 = vmatpush1.msra.mxu0 0.0
        %702 = vmatprep.subr.mxu0 0.0
        %703 = vmatpush1.msra.mxu0 0.0
        %704 = vmatprep.subr.mxu0 0.0
        %705 = vmatpush1.msra.mxu0 %v676
        %706 = vmatprep.subr.mxu0 0.0
        %707 = vmatpush1.msra.mxu0 %v675
        %708 = vmatprep.subr.mxu0 0.0
        %709 = vmatpush1.msra.mxu0 %v674
        %710 = vmatprep.subr.mxu0 0.0
        %711 = vmatpush1.msra.mxu0 %v673
        %712 = vmatprep.subr.mxu0 0.0
        %713 = vmatpush2.msra.mxu0 0.0
        %714 = vmatprep.subr.mxu0 0.0
        %715 = vmatpush2.msra.mxu0 0.0
        %716 = vmatprep.subr.mxu0 0.0
        %717 = vmatpush2.msra.mxu0 0.0
        %718 = vmatprep.subr.mxu0 0.0
        %719 = vmatpush2.msra.mxu0 0.0
        %720 = vmatprep.subr.mxu0 0.0
        %721 = vmatpush2.msra.mxu0 0.0
        %722 = vmatprep.subr.mxu0 0.0
        %723 = vmatpush2.msra.mxu0 0.0
        %724 = vmatprep.subr.mxu0 0.0
        %725 = vmatpush2.msra.mxu0 0.0
        %726 = vmatprep.subr.mxu0 0.0
        %727 = vmatpush2.msra.mxu0 0.0
        %728 = vmatprep.subr.mxu0 0.0
        %729 = vmatpush2.msra.mxu0 0.0
        %730 = vmatprep.subr.mxu0 0.0
        %731 = vmatpush2.msra.mxu0 0.0
        %732 = vmatprep.subr.mxu0 0.0
        %733 = vmatpush2.msra.mxu0 0.0
        %734 = vmatprep.subr.mxu0 0.0
        %735 = vmatpush2.msra.mxu0 0.0
        %736 = vmatprep.subr.mxu0 0.0
        %737 = vmatpush2.msra.mxu0 0.0
        %738 = vmatprep.subr.mxu0 0.0
        %739 = vmatpush2.msra.mxu0 0.0
        %740 = vmatprep.subr.mxu0 0.0
        %741 = vmatpush2.msra.mxu0 0.0
        %742 = vmatprep.subr.mxu0 0.0
        %743 = vmatpush2.msra.mxu0 0.0
        %744 = vmatprep.mubr.f32.mxu0 0.0
        %745 = vmatmul.mubr.f32.gmra.mxu0 %v678
        %v746 = vpop.f32.mrf.mxu0
        %v747 = vadd.f32 0.0, %v746
        %v748 = vpop.f32.mrf.mxu0
        %749 = vdwg.mxu0
        %750 = vst [vmem:[%s308] sm:$0xff] %v747
        %s751 = sand.u32 %s185, 1
        %s752 = scalar_lea.sflag [#allocation4], %s751
        %s753 = sand.u32 %s185, 1
        %s754 = smul.addr %s753, 8
        %s755 = scalar_lea.vmem [#allocation7], %s754
        // Predicated region
        $region57: #{tpu_custom_call.1} parent=47 // pred_check
          %p756 = pneg %p195
        $region58: #{tpu_custom_call.1} parent=47 // pred_check_branch
          %758 = sbr.rel (%p756) target = $region60
        $region59: #{tpu_custom_call.1} parent=47 // pred_region
          %s760 = ssub.s32 128, 128
          %761 = vsyncadd %s752, %s760
          %s762 = smul.addr %s25, 128
          %s763 = scalar_lea.hbm %s7, %s762
          %s765 = sshll.u32 %s755, 4
          %s766 = int_to_ptr.vmem [resolvable:$true] %s765
          %768 = dma.vmem_to_hbm [thread:$0]  %s766, 128, %s763, %s752
        $region60: #{tpu_custom_call.1} parent=47 // pred_fallthru
          _
      $region48: #{tpu_custom_call.1} parent=5 // pred_fallthru
        _
      %p769 = scmp.le.s32.totalorder 2, %s20
      // Predicated region
      $region61: #{tpu_custom_call.1} parent=5 // pred_check
        %p770 = pneg %p769
      $region62: #{tpu_custom_call.1} parent=5 // pred_check_branch
        %772 = sbr.rel (%p770) target = $region64
      $region63: #{tpu_custom_call.1} parent=5 // pred_region
        %s773 = ssub.s32 %s20, 2
        // Predicated region
        $region65: #{tpu_custom_call.1} parent=63 // pred_check
          %p774 = pneg %p201
        $region66: #{tpu_custom_call.1} parent=63 // pred_check_branch
          %776 = sbr.rel (%p774) target = $region68
        $region67: #{tpu_custom_call.1} parent=63 // pred_region
          %s777 = sand.u32 %s186, 1
          %s778 = scalar_lea.sflag [#allocation4], %s777
          %s779 = sand.u32 %s186, 1
          %s780 = smul.addr %s779, 8
          %s781 = scalar_lea.vmem [#allocation7], %s780
          %782 = dma.done %s778, 128
        $region68: #{tpu_custom_call.1} parent=63 // pred_fallthru
          _
      $region64: #{tpu_custom_call.1} parent=5 // pred_fallthru
        _
    $region6: #{tpu_custom_call.1} parent=1 // loop_footer
      %s24 = sadd.s32 1, %s20
    $region7: #{tpu_custom_call.1} parent=1 // loop_footer_branch
      %19 = sbr.rel target = $region3
    $region8: #{tpu_custom_call.1} parent=1 // loop_exit
      _
    %783 = vsyncpa [#allocation3], 1
    %s784 = scalar_lea.sflag [#allocation3], 1
    %785 = vsyncpa %s784, 1
    %786 = vsyncpa [#allocation6], 1
    %787 = vsyncpa [#allocation4], 1
    %s788 = scalar_lea.sflag [#allocation4], 1
    %789 = vsyncpa %s788, 1

</llo_original>
